<compile_context>
chip_gen: v7x
topology: tpu7x:2x2x1
jax: 0.10.0
libtpu: 0.0.40
codegen_flags: <defaults>
</compile_context>

<pallas_src>
import functools

import jax
import jax.numpy as jnp
from jax.experimental import pallas as pl
from jax.experimental.pallas import tpu as pltpu


def _max_tile_for_vmem(dx, b, h, budget_bytes=8 << 20):
    """Largest node-tile width (multiple of 128) such that the double-buffered
    x block + out block (f32) stay under `budget_bytes` (default 8 MiB, far
    below the 16 MiB v5e default scoped VMEM)."""
    per_col = 2 * 4 * (dx + b * h)          # 2 buffers * 4 bytes * (x rows + out rows)
    t = budget_bytes // per_col
    t -= t % 128
    return int(max(128, min(t, 32768)))


def _pick_tile_n(n_pad, max_tile):
    """n_pad is a multiple of 128.  Returns the largest multiple of 128 that
    divides n_pad, capped at max_tile, preferring >= 2 tiles (so the parallel
    node axis can shard across v7x's two TensorCores)."""
    cap = min(int(max_tile), n_pad)
    cap -= cap % 128
    cap = max(cap, 128)
    if n_pad >= 256:
        half = n_pad // 2
        half -= half % 128
        cap = max(128, min(cap, half))
    tile = cap
    while n_pad % tile != 0:
        tile -= 128
    return tile


def _aggr_mlp_kernel(x_ref, wxt_ref, zwb_ref, o_ref, *, final_act):
    """Grid = (num_node_tiles,).  Lane-dense (heads, nodes) compute layout.

    x_ref  : (Dx, TILE_N)     node features for this node tile (native layout)
    wxt_ref: (H, Dx)          x-half of the Linear weight, transposed (resident)
    zwb_ref: (B, H, 1)        precomputed z @ Wz + bias (resident)
    o_ref  : (B, H, TILE_N)   output tile (all batches at once)
    """
    # MXU: (H, Dx) @ (Dx, TILE_N) -> (H, TILE_N); nodes on the 128-lane axis.
    xw = jnp.dot(wxt_ref[...], x_ref[...], preferred_element_type=jnp.float32)

    # cat([z, x], -1) @ W == z @ W[:Dz] + x @ W[Dz:]; broadcast the per-batch
    # head vector across the node lanes: (B,H,1) + (1,H,TILE_N) -> (B,H,TILE_N).
    out = zwb_ref[...] + xw[None]

    if final_act == "relu":
        out = jnp.maximum(out, 0.0)
    elif final_act == "sigmoid":
        out = jax.nn.sigmoid(out)
    elif final_act == "softmax":
        out = jax.nn.softmax(out, axis=1)   # heads axis
    # final_act is None -> linear output

    o_ref[...] = out.astype(o_ref.dtype)


def graph_aggr_mlp_v2(z, x, w, bias, *, final_act=None, max_tile_n=None):
    """z: (B, Dz) f32, x: (Dx, N) f32, w: (Dz+Dx, heads) f32 (= torch weight.T),
    bias: (1, heads) f32.  Returns (B, N, heads) f32 (PyTorch contract)."""
    B, Dz = z.shape
    Dx, N = x.shape
    Din, H = w.shape
    assert Din == Dz + Dx, (Din, Dz, Dx)
    assert bias.shape == (1, H), bias.shape

    # Tiny wrapper-side glue (explicitly sanctioned by the review):
    #   * z-side half of the split matmul, (B,Dz)@(Dz,H)+bias -> (B,H,1) input.
    #   * x-half of the weight transposed for lane-dense (H, Dx) @ (Dx, TILE_N).
    zwb = (jnp.dot(z, w[:Dz, :], preferred_element_type=jnp.float32)
           + bias)                                   # (B, H)
    zwb = zwb[:, :, None].astype(jnp.float32)        # (B, H, 1)
    wxt = jnp.asarray(w[Dz:, :].T, dtype=jnp.float32)  # (H, Dx)

    # Pad the node dim up to a multiple of 128 so irregular N still tiles and
    # pipelines (padded columns are computed and sliced off afterwards).
    n_pad = ((N + 127) // 128) * 128
    x_in = x if n_pad == N else jnp.pad(x, ((0, 0), (0, n_pad - N)))

    if max_tile_n is None:
        max_tile_n = _max_tile_for_vmem(Dx, B, H)
    tile_n = _pick_tile_n(n_pad, max_tile_n)
    n_tiles = n_pad // tile_n

    kernel = functools.partial(_aggr_mlp_kernel, final_act=final_act)
    out_bhn = pl.pallas_call(
        kernel,
        out_shape=jax.ShapeDtypeStruct((B, H, n_pad), jnp.float32),
        grid=(n_tiles,),
        in_specs=[
            pl.BlockSpec((Dx, tile_n), lambda j: (0, j)),   # node tile of x
            pl.BlockSpec((H, Dx), lambda j: (0, 0)),        # Wx^T (resident)
            pl.BlockSpec((B, H, 1), lambda j: (0, 0, 0)),   # z@Wz + bias (resident)
        ],
        out_specs=pl.BlockSpec((B, H, tile_n), lambda j: (0, 0, j)),
        compiler_params=pltpu.CompilerParams(
            # Node tiles are fully independent -> megacore shards them on v7x;
            # no measurable impact (but harmless) on single-TC v5e/v6e.
            dimension_semantics=("parallel",),
        ),
    )(x_in, wxt, zwb)

    if n_pad != N:
        out_bhn = out_bhn[:, :, :N]

    # Restore the PyTorch (B, N, heads) output contract.
    # TODO(synk): if the downstream consumer can take (B, heads, N), drop this
    # transpose (it is a standalone memory-bound XLA pass over the output).
    return jnp.transpose(out_bhn, (0, 2, 1))


def _reference(z, x, w, bias, *, final_act=None):
    B, Dz = z.shape
    Dx, N = x.shape
    z_rep = jnp.repeat(z[:, None, :], N, axis=1)                 # (B, N, Dz)
    x_rep = jnp.broadcast_to(x.T[None, :, :], (B, N, Dx))        # (B, N, Dx)
    feat = jnp.concatenate([z_rep, x_rep], axis=-1)              # (B, N, Dz+Dx)
    out = jnp.dot(feat, w, precision=jax.lax.Precision.HIGHEST) + bias[0]
    if final_act == "relu":
        out = jnp.maximum(out, 0.0)
    elif final_act == "sigmoid":
        out = jax.nn.sigmoid(out)
    elif final_act == "softmax":
        out = jax.nn.softmax(out, axis=-1)
    return out


if __name__ == "__main__":
    key = jax.random.PRNGKey(0)
    kz, kx, kw, kb = jax.random.split(key, 4)

    B, Dz, Dx, HEADS = 2, 32, 16, 4

    w = (jax.random.normal(kw, (Dz + Dx, HEADS), dtype=jnp.float32)
         / jnp.sqrt(jnp.float32(Dz + Dx)))
    bias = 0.1 * jax.random.normal(kb, (1, HEADS), dtype=jnp.float32)
    z = jax.random.normal(kz, (B, Dz), dtype=jnp.float32)

    # Case 1: tiny irregular N (padded to a single 128-wide tile), relu.
    # Case 2: N=256 -> two 128-wide tiles (megacore-splittable path), sigmoid.
    # Case 3: irregular N=200 -> padded to 256, two tiles + slice-back, softmax.
    # Case 4: N=384 -> three tiles, linear (no final activation).
    cases = ((8, "relu"), (256, "sigmoid"), (200, "softmax"), (384, None))
    for n_nodes, act in cases:
        x = jax.random.normal(kx, (Dx, n_nodes), dtype=jnp.float32)

        out = graph_aggr_mlp_v2(z, x, w, bias, final_act=act)
        out = jax.block_until_ready(out)

        ref = _reference(z, x, w, bias, final_act=act)
        assert out.shape == (B, n_nodes, HEADS), out.shape
        err = float(jnp.max(jnp.abs(out - ref)))
        assert jnp.allclose(out, ref, rtol=1e-4, atol=1e-5), (n_nodes, act, err)

    print("KERNEL_OK")
</pallas_src>

<mosaic_0001>
module attributes {stable_mosaic.version = 11 : i64} {
  func.func @_aggr_mlp_kernel(%arg0: i32, %arg1: memref<16x128xf32, #tpu.memory_space<vmem>>, %arg2: memref<4x16xf32, #tpu.memory_space<vmem>>, %arg3: memref<2x4x1xf32, #tpu.memory_space<vmem>>, %arg4: memref<2x4x128xf32, #tpu.memory_space<vmem>>) attributes {dimension_semantics = [#tpu.dimension_semantics<parallel>], iteration_bounds = array<i64: 1>, scalar_prefetch = 0 : i64, scratch_operands = 0 : i64, tpu.core_type = #tpu.core_type<tc>, window_params = [{transform_indices = @transform_0, window_bounds = array<i64: 16, 128>}, {pipeline_mode = #tpu.pipeline_mode<synchronous>, transform_indices = @transform_1, window_bounds = array<i64: 4, 16>}, {pipeline_mode = #tpu.pipeline_mode<synchronous>, transform_indices = @transform_2, window_bounds = array<i64: 2, 4, 1>}, {transform_indices = @transform_3, window_bounds = array<i64: 2, 4, 128>}]} {
    %c0 = arith.constant 0 : index
    %c0_0 = arith.constant 0 : index
    %0 = vector.load %arg2[%c0, %c0_0] : memref<4x16xf32, #tpu.memory_space<vmem>>, vector<4x16xf32>
    %c0_1 = arith.constant 0 : index
    %c0_2 = arith.constant 0 : index
    %1 = vector.load %arg1[%c0_1, %c0_2] : memref<16x128xf32, #tpu.memory_space<vmem>>, vector<16x128xf32>
    %cst = arith.constant dense<0.000000e+00> : vector<4x128xf32>
    %2 = tpu.matmul %0, %1, %cst {dimension_numbers = #tpu.dot_dimension_numbers<[1], [0], [0], [1], [0, 0, 1, 1], [], []>} : vector<4x16xf32>, vector<16x128xf32>, vector<4x128xf32> -> vector<4x128xf32>
    %c0_3 = arith.constant 0 : index
    %c0_4 = arith.constant 0 : index
    %c0_5 = arith.constant 0 : index
    %3 = vector.load %arg3[%c0_3, %c0_4, %c0_5] : memref<2x4x1xf32, #tpu.memory_space<vmem>>, vector<2x4x1xf32>
    %4 = vector.shape_cast %2 : vector<4x128xf32> to vector<1x4x128xf32>
    %5 = vector.broadcast %3 : vector<2x4x1xf32> to vector<2x4x128xf32>
    %6 = vector.broadcast %4 : vector<1x4x128xf32> to vector<2x4x128xf32>
    %7 = arith.addf %5, %6 : vector<2x4x128xf32>
    %cst_6 = arith.constant 0.000000e+00 : f32
    %8 = vector.broadcast %cst_6 : f32 to vector<2x4x128xf32>
    %9 = arith.maximumf %7, %8 : vector<2x4x128xf32>
    %c0_7 = arith.constant 0 : index
    %c0_8 = arith.constant 0 : index
    %c0_9 = arith.constant 0 : index
    %10 = vector.load %arg4[%c0_7, %c0_8, %c0_9] : memref<2x4x128xf32, #tpu.memory_space<vmem>>, vector<2x4x128xf32>
    tpu.vector_store %arg4[%c0_7, %c0_8, %c0_9], %9 {strides = array<i32>} : memref<2x4x128xf32, #tpu.memory_space<vmem>>, vector<2x4x128xf32>,
    return
  }
  func.func @transform_0(%arg0: i32) -> (i32, i32) {
    %c0_i32 = arith.constant 0 : i32
    %c0_i32_0 = arith.constant 0 : i32
    return %c0_i32, %arg0 : i32, i32
  }
  func.func @transform_1(%arg0: i32) -> (i32, i32) {
    %c0_i32 = arith.constant 0 : i32
    %c0_i32_0 = arith.constant 0 : i32
    %c0_i32_1 = arith.constant 0 : i32
    return %c0_i32, %c0_i32_0 : i32, i32
  }
  func.func @transform_2(%arg0: i32) -> (i32, i32, i32) {
    %c0_i32 = arith.constant 0 : i32
    %c0_i32_0 = arith.constant 0 : i32
    %c0_i32_1 = arith.constant 0 : i32
    %c0_i32_2 = arith.constant 0 : i32
    return %c0_i32, %c0_i32_0, %c0_i32_1 : i32, i32, i32
  }
  func.func @transform_3(%arg0: i32) -> (i32, i32, i32) {
    %c0_i32 = arith.constant 0 : i32
    %c0_i32_0 = arith.constant 0 : i32
    %c0_i32_1 = arith.constant 0 : i32
    return %c0_i32, %c0_i32_0, %arg0 : i32, i32, i32
  }
}

</mosaic_0001>

<llo_original>
// kernel: tpu_custom_call.1
$region0: #{tpu_custom_call.1}
  #allocation0 [shape = 'u32[]', space=smem, size = 0x4, offset = 0x4, fixed_abs, tag = 'smem constant byte address 0x4 - core index']
  #allocation1 [shape = 'u32[144,128]{1,0:T(1,128)}', space=vmem, size = 0x12000, scoped, tag = 'internal scratch']
  %s0 = inlined_call_operand.hbm [shape: f32[16,128], index: 0, kind: input, shape index: {}]
  %s1 = inlined_call_operand.vmem [shape: f32[4,16], index: 1, kind: input, shape index: {}]
  %s2 = inlined_call_operand.vmem [shape: f32[2,4,1], index: 2, kind: input, shape index: {}]
  %s3 = inlined_call_operand.hbm [shape: f32[2,4,128], index: 3, kind: output, shape index: {}]
  %s4 = sld [smem:[#allocation0]]
  $region26: #{tpu_custom_call.1} parent=0
    _
  %s6 = ssub.s32 1, %s4
  %s7 = scalar_select 0, %s6, %s4
  $region1: #{tpu_custom_call.1} parent=0
    #allocation2 [shape = 'u8[8192]{0}', space=vmem, size = 0x2000, scoped, tag = 'input window, operand 0, single buffered']
    #allocation3 [shape = 's32[1]{0}', space=sflag, size = 0x4, scoped, tag = 'scoped memory for tpu_custom_call.1']
    #allocation4 [shape = 's32[1]{0}', space=sflag, size = 0x4, scoped, tag = 'scoped memory for tpu_custom_call.1']
    #allocation5 [shape = 'u8[4096]{0}', space=vmem, size = 0x1000, scoped, tag = 'output window, operand 0, single buffered']
    %8 = vsyncpa [#allocation3], 0
    %9 = vsyncpa [#allocation4], 0
    // Predicated region
    $region2: #{tpu_custom_call.1} parent=1 // pred_check
      _
    $region3: #{tpu_custom_call.1} parent=1 // pred_check_branch
      %11 = sbr.rel (0) target = $region5
    $region4: #{tpu_custom_call.1} parent=1 // pred_region
      %s13 = ssub.s32 256, 256
      %14 = vsyncadd [#allocation3], %s13
      %s15 = sshll.u32 [#allocation2], 4
      %s16 = int_to_ptr.vmem [resolvable:$true] %s15
      %21 = dma.hbm_to_vmem [thread:$0]  %s0, 256, %s16, [#allocation3], 128, 128, 8
    $region5: #{tpu_custom_call.1} parent=1 // pred_fallthru
      _
    // Predicated region
    $region6: #{tpu_custom_call.1} parent=1 // pred_check
      _
    $region7: #{tpu_custom_call.1} parent=1 // pred_check_branch
      %23 = sbr.rel (0) target = $region9
    $region8: #{tpu_custom_call.1} parent=1 // pred_region
      _
    $region9: #{tpu_custom_call.1} parent=1 // pred_fallthru
      _
    // Predicated region
    $region10: #{tpu_custom_call.1} parent=1 // pred_check
      _
    $region11: #{tpu_custom_call.1} parent=1 // pred_check_branch
      %25 = sbr.rel (0) target = $region13
    $region12: #{tpu_custom_call.1} parent=1 // pred_region
      _
    $region13: #{tpu_custom_call.1} parent=1 // pred_fallthru
      _
    // Predicated region
    $region14: #{tpu_custom_call.1} parent=1 // pred_check
      _
    $region15: #{tpu_custom_call.1} parent=1 // pred_check_branch
      %27 = sbr.rel (0) target = $region17
    $region16: #{tpu_custom_call.1} parent=1 // pred_region
      %28 = dma.done [#allocation3], 256
    $region17: #{tpu_custom_call.1} parent=1 // pred_fallthru
      _
    %v29 = vld [vmem:[%s1] sm:$0xf]
    %v30 = vld [vmem:[#allocation2] sm:$0xff]
    %v31 = vld [vmem:[#allocation2 + $0x8] sm:$0xff]
    %vm32 = vcmask 130048
    %v34 = vsel %vm32, %v29, 0
    %36 = vmatprep.subr.mxu0 0.0
    %37 = vmatpush1.msra.mxu0 %v30
    %38 = vmatprep.subr.mxu0 0.0
    %39 = vmatpush1.msra.mxu0 %v31
    %40 = vmatprep.subr.mxu0 0.0
    %41 = vmatpush1.msra.mxu0 0.0
    %42 = vmatprep.subr.mxu0 0.0
    %43 = vmatpush1.msra.mxu0 0.0
    %44 = vmatprep.subr.mxu0 0.0
    %45 = vmatpush1.msra.mxu0 0.0
    %46 = vmatprep.subr.mxu0 0.0
    %47 = vmatpush1.msra.mxu0 0.0
    %48 = vmatprep.subr.mxu0 0.0
    %49 = vmatpush1.msra.mxu0 0.0
    %50 = vmatprep.subr.mxu0 0.0
    %51 = vmatpush1.msra.mxu0 0.0
    %52 = vmatprep.subr.mxu0 0.0
    %53 = vmatpush1.msra.mxu0 0.0
    %54 = vmatprep.subr.mxu0 0.0
    %55 = vmatpush1.msra.mxu0 0.0
    %56 = vmatprep.subr.mxu0 0.0
    %57 = vmatpush1.msra.mxu0 0.0
    %58 = vmatprep.subr.mxu0 0.0
    %59 = vmatpush1.msra.mxu0 0.0
    %60 = vmatprep.subr.mxu0 0.0
    %61 = vmatpush1.msra.mxu0 0.0
    %62 = vmatprep.subr.mxu0 0.0
    %63 = vmatpush1.msra.mxu0 0.0
    %64 = vmatprep.subr.mxu0 0.0
    %65 = vmatpush1.msra.mxu0 0.0
    %66 = vmatprep.subr.mxu0 0.0
    %67 = vmatpush1.msra.mxu0 0.0
    %68 = vmatprep.subr.mxu0 0.0
    %69 = vmatpush1.msra.mxu0 0.0
    %70 = vmatprep.subr.mxu0 0.0
    %71 = vmatpush1.msra.mxu0 0.0
    %72 = vmatprep.subr.mxu0 0.0
    %73 = vmatpush1.msra.mxu0 0.0
    %74 = vmatprep.subr.mxu0 0.0
    %75 = vmatpush1.msra.mxu0 0.0
    %76 = vmatprep.subr.mxu0 0.0
    %77 = vmatpush1.msra.mxu0 0.0
    %78 = vmatprep.subr.mxu0 0.0
    %79 = vmatpush1.msra.mxu0 0.0
    %80 = vmatprep.subr.mxu0 0.0
    %81 = vmatpush1.msra.mxu0 0.0
    %82 = vmatprep.subr.mxu0 0.0
    %83 = vmatpush1.msra.mxu0 0.0
    %84 = vmatprep.subr.mxu0 0.0
    %85 = vmatpush1.msra.mxu0 0.0
    %86 = vmatprep.subr.mxu0 0.0
    %87 = vmatpush1.msra.mxu0 0.0
    %88 = vmatprep.subr.mxu0 0.0
    %89 = vmatpush1.msra.mxu0 0.0
    %90 = vmatprep.subr.mxu0 0.0
    %91 = vmatpush1.msra.mxu0 0.0
    %92 = vmatprep.subr.mxu0 0.0
    %93 = vmatpush1.msra.mxu0 0.0
    %94 = vmatprep.subr.mxu0 0.0
    %95 = vmatpush1.msra.mxu0 0.0
    %96 = vmatprep.subr.mxu0 0.0
    %97 = vmatpush1.msra.mxu0 0.0
    %98 = vmatprep.subr.mxu0 0.0
    %99 = vmatpush1.msra.mxu0 0.0
    %100 = vmatprep.mubr.f32.mxu0 0.0
    %101 = vmatmul.mubr.f32.gmra.mrb[0].mxu0 %v34
    %v102 = vpop.f32.mrb[0].mxu0
    %v103 = vadd.f32 0.0, %v102
    %v104 = vpop.f32.mrb[0].mxu0
    %105 = vdwg.mxu0
    %v106 = vld [vmem:[%s2] sm:$0xf]
    %v107 = vld [vmem:[%s2 + $0x4] sm:$0xf]
    %109 = vset.pattern.permute.xlu0 0
    %110 = vperm.xlu0 %109, %v106
    %v111 = vpop.permute.xlu0 %110
    %114 = vset.pattern.permute.xlu0 0
    %115 = vperm.xlu0 %114, %v107
    %v116 = vpop.permute.xlu0 %115
    %v118 = vadd.f32 %v111, %v103
    %v119 = vadd.f32 %v116, %v103
    %v120 = vmax.f32 %v118, 0.0
    %v121 = vmax.f32 %v119, 0.0
    %122 = vst [vmem:[#allocation5] sm:$0xf] %v120
    %123 = vst [vmem:[#allocation5 + $0x4] sm:$0xf] %v121
    // Predicated region
    $region18: #{tpu_custom_call.1} parent=1 // pred_check
      _
    $region19: #{tpu_custom_call.1} parent=1 // pred_check_branch
      %125 = sbr.rel (0) target = $region21
    $region20: #{tpu_custom_call.1} parent=1 // pred_region
      %s127 = ssub.s32 128, 128
      %128 = vsyncadd [#allocation4], %s127
      %s129 = sshll.u32 [#allocation5], 4
      %s130 = int_to_ptr.vmem [resolvable:$true] %s129
      %135 = dma.vmem_to_hbm [thread:$0]  %s130, 128, %s3, [#allocation4], 64, 64, 4
    $region21: #{tpu_custom_call.1} parent=1 // pred_fallthru
      _
    // Predicated region
    $region22: #{tpu_custom_call.1} parent=1 // pred_check
      _
    $region23: #{tpu_custom_call.1} parent=1 // pred_check_branch
      %137 = sbr.rel (0) target = $region25
    $region24: #{tpu_custom_call.1} parent=1 // pred_region
      %138 = dma.done [#allocation4], 128
    $region25: #{tpu_custom_call.1} parent=1 // pred_fallthru
      _
    %139 = vsyncpa [#allocation3], 1
    %140 = vsyncpa [#allocation4], 1

</llo_original>
